<compile_context>
chip_gen: v6e
topology: v6e:2x2x1
jax: 0.10.0
libtpu: 0.0.40
codegen_flags: <defaults>
</compile_context>

<pallas_src>
import functools

import jax
import jax.numpy as jnp
from jax.experimental import pallas as pl
from jax.experimental.pallas import tpu as pltpu


def _tensor_reduction_kernel(w_ref, p_ref, o_ref, *, row_chunk):
    """w_ref: (TILE_I, J*K) weight tile; p_ref: (1, J*K) f32 = vec(outer(x, x));
    o_ref: (TILE_I, 1).  Exact-f32 VPU multiply + XLU lane reduction, chunked
    over rows so the f32 temporary stays small regardless of tile size."""
    tile_i = w_ref.shape[0]
    p = p_ref[...]  # (1, J*K) f32, VMEM-resident across grid steps

    def compute(r0, rows):
        w = w_ref[pl.ds(r0, rows), :].astype(jnp.float32)
        o_ref[pl.ds(r0, rows), :] = jnp.sum(
            w * p, axis=1, keepdims=True
        ).astype(o_ref.dtype)

    n_full = tile_i // row_chunk

    def body(c, carry):
        compute(pl.multiple_of(c * row_chunk, row_chunk), row_chunk)
        return carry

    jax.lax.fori_loop(0, n_full, body, 0)

    rem = tile_i % row_chunk  # static
    if rem:
        compute(n_full * row_chunk, rem)


def _vmem_capacity_bytes() -> int:
    """Physical per-core VMEM, with a conservative (v7x-sized) fallback."""
    try:
        info = pltpu.get_tpu_info()
        for name in ("vmem_capacity_bytes", "vmem_bytes"):
            cap = getattr(info, name, None)
            if cap:
                return int(cap)
    except Exception:
        pass
    return 64 * 1024 * 1024


def _plan(i, jk, w_itemsize, out_itemsize, tile_i=None):
    """Pick (tile_i, row_chunk, vmem_limit_bytes) per TPU generation."""
    cap = _vmem_capacity_bytes()
    # ~82% of physical VMEM: ~104 MiB on v5e/v6e (128 MiB), ~52 MiB on v7x (64 MiB).
    vmem_limit = min(int(cap * 0.82), 112 * 1024 * 1024)

    # dtype-native sublane multiple (f32: 8, bf16: 16, int8/fp8: 32).
    sub = {4: 8, 2: 16, 1: 32}.get(w_itemsize, 8)

    if tile_i is None:
        # Static per-invocation VMEM costs (bytes), subtracted from the budget:
        p_bytes = 2 * 8 * jk * 4          # (1, J*K) f32 padded to 8 sublanes, 2 bufs
        temp_bytes = 4 * 1024 * 1024      # bounded in-kernel f32 chunk temporaries
        reserve = 2 * 1024 * 1024         # compiler internal scratch, misc
        stream = vmem_limit - p_bytes - temp_bytes - reserve
        # Per streamed row: weight row (2 buffers) + (row, 1) output padded to
        # 128 lanes (2 buffers).
        per_row = 2 * jk * w_itemsize + 2 * 128 * out_itemsize
        rows = max(sub, stream // per_row)
        tile_i = i if rows >= i else max(sub, (rows // sub) * sub)
        # v7x has 2 TensorCores: make sure the "parallel" I axis has >= 2 tiles
        # so both cores (and both HBM streams) get work.
        if cap < 100 * 1024 * 1024 and tile_i >= i and i >= 2 * sub:
            tile_i = max(sub, ((-(-i // 2)) // sub) * sub)
    else:
        tile_i = i if tile_i >= i else max(sub, (min(tile_i, i) // sub) * sub)

    # Row chunk bounding the in-kernel f32 temporary to ~2 MiB.
    rc = max(sub, ((2 * 1024 * 1024) // (jk * 4)) // sub * sub)
    row_chunk = min(tile_i, rc)
    return tile_i, row_chunk, vmem_limit


@functools.partial(
    jax.jit, static_argnames=("tile_i", "row_chunk", "vmem_limit_bytes")
)
def _tensor_reduction_call(weight, x, *, tile_i, row_chunk, vmem_limit_bytes):
    i, j, k = weight.shape
    jk = j * k
    out_dtype = jnp.result_type(weight.dtype, x.dtype)

    # Free, contiguous reshape of the parameter; tiny f32 outer product whose
    # vec() is passed LANE-DENSE (1, J*K): padded VMEM footprint is 8x, not
    # 128x, its nominal size.  P stays f32 even for low-precision weights.
    w2d = weight.reshape(i, jk)
    xf = x.astype(jnp.float32)
    p = (xf[:, None] * xf[None, :]).reshape(1, jk)

    w_itemsize = jnp.dtype(weight.dtype).itemsize
    out_itemsize = jnp.dtype(out_dtype).itemsize

    out2d = pl.pallas_call(
        functools.partial(_tensor_reduction_kernel, row_chunk=row_chunk),
        out_shape=jax.ShapeDtypeStruct((i, 1), out_dtype),
        grid_spec=pltpu.PrefetchScalarGridSpec(
            num_scalar_prefetch=0,
            grid=(pl.cdiv(i, tile_i),),
            in_specs=[
                # Streamed (double-buffered) weight tiles over I — the only
                # big HBM stream; the kernel is HBM-bandwidth bound.
                pl.BlockSpec((tile_i, jk), lambda n: (n, 0)),
                # Constant index_map: P fetched once, stays VMEM-resident.
                pl.BlockSpec((1, jk), lambda n: (0, 0)),
            ],
            out_specs=pl.BlockSpec((tile_i, 1), lambda n: (n, 0)),
        ),
        compiler_params=pltpu.CompilerParams(
            dimension_semantics=("parallel",),
            vmem_limit_bytes=vmem_limit_bytes,
        ),
        cost_estimate=pl.CostEstimate(
            flops=2 * i * jk,
            bytes_accessed=i * jk * w_itemsize + jk * 4 + i * out_itemsize,
            transcendentals=0,
        ),
    )(w2d, p)
    return out2d[:, 0]


def tensor_reduction(weight: jax.Array, x: jax.Array, *, tile_i=None) -> jax.Array:
    i, j, k = weight.shape
    assert j == k, "TensorReduction.forward requires j == k"
    assert x.shape == (k,)
    out_dtype = jnp.result_type(weight.dtype, x.dtype)
    tile_i, row_chunk, vmem_limit = _plan(
        i, j * k,
        jnp.dtype(weight.dtype).itemsize,
        jnp.dtype(out_dtype).itemsize,
        tile_i=tile_i,
    )
    return _tensor_reduction_call(
        weight, x,
        tile_i=tile_i, row_chunk=row_chunk, vmem_limit_bytes=vmem_limit,
    )


if __name__ == "__main__":
    # Small shapes implied by the forward: weight (i, j, k) with j == k, x (k,).
    I, J, K = 64, 32, 32
    key = jax.random.PRNGKey(0)
    kw, kx = jax.random.split(key)
    weight = jax.random.normal(kw, (I, J, K), dtype=jnp.float32)  # ~ torch.randn(i, j, k)
    x = jax.random.normal(kx, (K,), dtype=jnp.float32)

    # Force a multi-step grid at these tiny shapes so the I-tiled pipeline is
    # exercised (auto-planning would otherwise pick a single tile).
    out = jax.block_until_ready(tensor_reduction(weight, x, tile_i=16))

    # Reference: same math as torch.matmul(X.t(), torch.matmul(W, X).t()).
    ref = jnp.einsum("ijk,j,k->i", weight, x, x,
                     precision=jax.lax.Precision.HIGHEST)
    assert out.shape == (I,)
    assert jnp.allclose(out, ref, rtol=1e-3, atol=1e-3), float(jnp.max(jnp.abs(out - ref)))
    print("KERNEL_OK")
</pallas_src>

<mosaic_0001>
module attributes {stable_mosaic.version = 11 : i64} {
  func.func @_tensor_reduction_kernel(%arg0: i32, %arg1: memref<16x1024xf32, #tpu.memory_space<vmem>>, %arg2: memref<1x1024xf32, #tpu.memory_space<vmem>>, %arg3: memref<16x1xf32, #tpu.memory_space<vmem>>) attributes {dimension_semantics = [#tpu.dimension_semantics<parallel>], iteration_bounds = array<i64: 4>, scalar_prefetch = 0 : i64, scratch_operands = 0 : i64, tpu.core_type = #tpu.core_type<tc>, window_params = [{transform_indices = @transform_0, window_bounds = array<i64: 16, 1024>}, {pipeline_mode = #tpu.pipeline_mode<synchronous>, transform_indices = @transform_1, window_bounds = array<i64: 1, 1024>}, {transform_indices = @transform_2, window_bounds = array<i64: 16, 1>}]} {
    %c0 = arith.constant 0 : index
    %c0_0 = arith.constant 0 : index
    %0 = vector.load %arg2[%c0, %c0_0] : memref<1x1024xf32, #tpu.memory_space<vmem>>, vector<1x1024xf32>
    %c0_i32 = arith.constant 0 : i32
    %c16_i32 = arith.constant 16 : i32
    %1 = arith.muli %c0_i32, %c16_i32 : i32
    %2 = tpu.assume_multiple %1, 16 : i32
    %3 = arith.index_cast %2 : i32 to index
    %c0_1 = arith.constant 0 : index
    %4 = vector.load %arg1[%3, %c0_1] : memref<16x1024xf32, #tpu.memory_space<vmem>>, vector<16x1024xf32>
    %5 = vector.broadcast %0 : vector<1x1024xf32> to vector<16x1024xf32>
    %6 = arith.mulf %4, %5 : vector<16x1024xf32>
    %cst = arith.constant dense<0.000000e+00> : vector<16xf32>
    %7 = vector.multi_reduction <add>, %6, %cst [1] : vector<16x1024xf32> to vector<16xf32>
    %8 = vector.shape_cast %7 : vector<16xf32> to vector<16x1xf32>
    %9 = arith.index_cast %2 : i32 to index
    %c0_2 = arith.constant 0 : index
    %10 = vector.load %arg3[%9, %c0_2] : memref<16x1xf32, #tpu.memory_space<vmem>>, vector<16x1xf32>
    tpu.vector_store %arg3[%9, %c0_2], %8 {strides = array<i32>} : memref<16x1xf32, #tpu.memory_space<vmem>>, vector<16x1xf32>,
    %c1_i32 = arith.constant 1 : i32
    return
  }
  func.func @transform_0(%arg0: i32) -> (i32, i32) {
    %c0_i32 = arith.constant 0 : i32
    %c0_i32_0 = arith.constant 0 : i32
    return %arg0, %c0_i32 : i32, i32
  }
  func.func @transform_1(%arg0: i32) -> (i32, i32) {
    %c0_i32 = arith.constant 0 : i32
    %c0_i32_0 = arith.constant 0 : i32
    %c0_i32_1 = arith.constant 0 : i32
    return %c0_i32, %c0_i32_0 : i32, i32
  }
  func.func @transform_2(%arg0: i32) -> (i32, i32) {
    %c0_i32 = arith.constant 0 : i32
    %c0_i32_0 = arith.constant 0 : i32
    return %arg0, %c0_i32 : i32, i32
  }
}

</mosaic_0001>

<llo_original>
// kernel: _tensor_reduction_call.1
$region0: #{_tensor_reduction_call.1}
  #allocation0 [shape = 'u32[]', space=smem, size = 0x4, offset = 0x4, fixed_abs, tag = 'smem constant byte address 0x4 - core index']
  #allocation1 [shape = 'u32[144,128]{1,0:T(1,128)}', space=vmem, size = 0x12000, scoped, tag = 'internal scratch']
  %s0 = inlined_call_operand.vmem [shape: f32[64,1024], index: 0, kind: input, shape index: {}]
  %s1 = inlined_call_operand.vmem [shape: f32[1,1024], index: 1, kind: input, shape index: {}]
  %s2 = inlined_call_operand.vmem [shape: f32[64,1], index: 2, kind: output, shape index: {}]
  %s3 = sld [smem:[#allocation0]]
  $region41: #{_tensor_reduction_call.1} parent=0
    _
  %s5 = ssub.s32 1, %s3
  %s6 = scalar_select 0, %s5, %s3
  loop: start=0, step=1, limit=6
  $region2: #{_tensor_reduction_call.1} parent=0 // loop_pre_header
    _
  $region3: #{_tensor_reduction_call.1} parent=0 // loop_header
    %s8 = sphi 0, %s12
    %p9 = scmp.ge.s32.totalorder %s8, 6
    %s18 = sphi 0, %s20
    %s21 = sphi 0, %s18
    %s22 = sphi 0, %s21
    %s38 = sphi 0, %s22
    %s42 = sphi 0, %s42
    %s44 = sphi 0, %s42
    %s45 = sphi 0, %s44
    %s59 = sphi 0, %s45
    %s65 = sphi 0, %s67
    %s68 = sphi 0, %s65
    %s69 = sphi 0, %s68
    %s85 = sphi 0, %s69
  $region4: #{_tensor_reduction_call.1} parent=0 // loop_header_branch
    %11 = sbr.rel (%p9) target = $region8
  $region5: #{_tensor_reduction_call.1} parent=0 // loop_body
    %s13 = ssub.s32 %s8, 1
    %s14 = ssub.s32 %s8, 2
    %s15 = sadd.s32 %s8, 1
    %s16 = ssub.s32 %s8, %s15
    %p17 = scmp.eq.s32.totalorder %s16, 0
    %s19 = sadd.s32 %s18, 1
    %s20 = scalar_select %p17, %s18, %s19
    %p23 = pneg %p17
    %p24 = scmp.eq.s32.totalorder %s8, 3
    %p25 = por %p23, %p24
    %p26 = scmp.ne.s32.totalorder %s18, %s21
    %p27 = scmp.eq.s32.totalorder %s8, 0
    %p28 = por %p26, %p27
    %p29 = scmp.ne.s32.totalorder %s18, %s21
    %p30 = scmp.eq.s32.totalorder %s13, 3
    %p31 = por %p29, %p30
    %p32 = scmp.ne.s32.totalorder %s21, %s22
    %p33 = scmp.eq.s32.totalorder %s13, 0
    %p34 = por %p32, %p33
    %p35 = scmp.ne.s32.totalorder %s21, %s22
    %p36 = scmp.eq.s32.totalorder %s14, 3
    %p37 = por %p35, %p36
    %p39 = scmp.ne.s32.totalorder %s22, %s38
    %p40 = scmp.eq.s32.totalorder %s14, 0
    %p41 = por %p39, %p40
    %s43 = sadd.s32 %s42, 1
    %p46 = scmp.eq.s32.totalorder %s8, 3
    %p47 = scmp.ne.s32.totalorder %s42, %s44
    %p48 = scmp.eq.s32.totalorder %s8, 0
    %p49 = por %p47, %p48
    %p50 = scmp.ne.s32.totalorder %s42, %s44
    %p51 = scmp.eq.s32.totalorder %s13, 3
    %p52 = por %p50, %p51
    %p53 = scmp.ne.s32.totalorder %s44, %s45
    %p54 = scmp.eq.s32.totalorder %s13, 0
    %p55 = por %p53, %p54
    %p56 = scmp.ne.s32.totalorder %s44, %s45
    %p57 = scmp.eq.s32.totalorder %s14, 3
    %p58 = por %p56, %p57
    %p60 = scmp.ne.s32.totalorder %s45, %s59
    %p61 = scmp.eq.s32.totalorder %s14, 0
    %p62 = por %p60, %p61
    %s63 = ssub.s32 %s8, %s15
    %p64 = scmp.eq.s32.totalorder %s63, 0
    %s66 = sadd.s32 %s65, 1
    %s67 = scalar_select %p64, %s65, %s66
    %p70 = pneg %p64
    %p71 = scmp.eq.s32.totalorder %s8, 3
    %p72 = por %p70, %p71
    %p73 = scmp.ne.s32.totalorder %s65, %s68
    %p74 = scmp.eq.s32.totalorder %s8, 0
    %p75 = por %p73, %p74
    %p76 = scmp.ne.s32.totalorder %s65, %s68
    %p77 = scmp.eq.s32.totalorder %s13, 3
    %p78 = por %p76, %p77
    %p79 = scmp.ne.s32.totalorder %s68, %s69
    %p80 = scmp.eq.s32.totalorder %s13, 0
    %p81 = por %p79, %p80
    %p82 = scmp.ne.s32.totalorder %s68, %s69
    %p83 = scmp.eq.s32.totalorder %s14, 3
    %p84 = por %p82, %p83
    %p86 = scmp.ne.s32.totalorder %s69, %s85
    %p87 = scmp.eq.s32.totalorder %s14, 0
    %p88 = por %p86, %p87
    %p89 = scmp.le.s32.totalorder 1, %s8
    %p90 = scmp.lt.s32.totalorder %s8, 5
    %p91 = pnand %p89, %p90
    %p92 = pneg %p91
    // Predicated region
    $region9: #{_tensor_reduction_call.1} parent=5 // pred_check
      _
    $region10: #{_tensor_reduction_call.1} parent=5 // pred_check_branch
      %94 = sbr.rel (%p91) target = $region12
    $region11: #{_tensor_reduction_call.1} parent=5 // pred_region
      %s95 = ssub.s32 %s8, 1
      // Predicated region
      $region13: #{_tensor_reduction_call.1} parent=11 // pred_check
        %p96 = pneg %p55
      $region14: #{_tensor_reduction_call.1} parent=11 // pred_check_branch
        %98 = sbr.rel (%p96) target = $region16
      $region15: #{_tensor_reduction_call.1} parent=11 // pred_region
        _
      $region16: #{_tensor_reduction_call.1} parent=11 // pred_fallthru
        _
    $region12: #{_tensor_reduction_call.1} parent=5 // pred_fallthru
      _
    %p99 = scmp.lt.s32.totalorder %s8, 4
    // Predicated region
    $region17: #{_tensor_reduction_call.1} parent=5 // pred_check
      %p100 = pneg %p99
    $region18: #{_tensor_reduction_call.1} parent=5 // pred_check_branch
      %102 = sbr.rel (%p100) target = $region20
    $region19: #{_tensor_reduction_call.1} parent=5 // pred_region
      // Predicated region
      $region21: #{_tensor_reduction_call.1} parent=19 // pred_check
        %p103 = pneg %p28
      $region22: #{_tensor_reduction_call.1} parent=19 // pred_check_branch
        %105 = sbr.rel (%p103) target = $region24
      $region23: #{_tensor_reduction_call.1} parent=19 // pred_region
        %s106 = smul.u32 2, %s8
        %p107 = scmp.lt.s32.totalorder %s106, 7
        %s108 = scalar_select %p107, %s106, 7
        %s109 = smul.addr %s108, 8
        %s110 = smul.addr %s109, 8
        %s111 = scalar_lea.vmem %s0, %s110
        %s112 = smul.u32 2, %s8
      $region24: #{_tensor_reduction_call.1} parent=19 // pred_fallthru
        _
    $region20: #{_tensor_reduction_call.1} parent=5 // pred_fallthru
      _
    %p113 = scmp.le.s32.totalorder 1, %s8
    %p114 = scmp.lt.s32.totalorder %s8, 5
    %p115 = pnand %p113, %p114
    %p116 = pneg %p115
    // Predicated region
    $region25: #{_tensor_reduction_call.1} parent=5 // pred_check
      _
    $region26: #{_tensor_reduction_call.1} parent=5 // pred_check_branch
      %118 = sbr.rel (%p115) target = $region28
    $region27: #{_tensor_reduction_call.1} parent=5 // pred_region
      %s119 = ssub.s32 %s8, 1
      %s120 = smul.u32 2, %s13
      %p121 = scmp.lt.s32.totalorder %s120, 7
      %s122 = scalar_select %p121, %s120, 7
      %s123 = smul.addr %s122, 8
      %s124 = smul.addr %s123, 8
      %s125 = scalar_lea.vmem %s0, %s124
      %p126 = pneg %p34
      %p127 = pneg %p31
      %p128 = pneg %p55
      %p129 = pneg %p52
      %p130 = pneg %p81
      %p131 = pneg %p78
      %s132 = smul.u32 2, %s13
      %p133 = scmp.lt.s32.totalorder %s132, 7
      %s134 = scalar_select %p133, %s132, 7
      %s135 = smul.addr %s134, 8
      %s136 = scalar_lea.vmem %s2, %s135
      %s137 = smul.u32 2, %s13
      %p138 = scmp.lt.s32.totalorder %s137, 7
      %s139 = scalar_select %p138, %s137, 7
      %s140 = smul.addr %s139, 8
      %s141 = smul.addr %s140, 8
      %s142 = scalar_lea.vmem %s0, %s141
      %s143 = smul.u32 2, %s13
      %s144 = smul.u32 2, %s13
      %p145 = scmp.lt.s32.totalorder %s144, 7
      %s146 = scalar_select %p145, %s144, 7
      %s147 = smul.addr %s146, 8
      %s148 = scalar_lea.vmem %s2, %s147
      %s149 = smul.u32 2, %s13
      %v150 = vld [vmem:[%s1] sm:$0xff]
      %s151 = smul.u32 0, 8
      %s152 = smul.addr %s151, 8
      %s153 = scalar_lea.vmem %s142, %s152
      %v154 = vld [vmem:[%s153] sm:$0xff]
      %v155 = vld [vmem:[%s153 + $0x8] sm:$0xff]
      %v156 = vld [vmem:[%s153 + $0x10] sm:$0xff]
      %v157 = vld [vmem:[%s153 + $0x18] sm:$0xff]
      %v158 = vld [vmem:[%s153 + $0x20] sm:$0xff]
      %v159 = vld [vmem:[%s153 + $0x28] sm:$0xff]
      %v160 = vld [vmem:[%s153 + $0x30] sm:$0xff]
      %v161 = vld [vmem:[%s153 + $0x38] sm:$0xff]
      %v162 = vld [vmem:[%s153 + $0x40] sm:$0xff]
      %v163 = vld [vmem:[%s153 + $0x48] sm:$0xff]
      %v164 = vld [vmem:[%s153 + $0x50] sm:$0xff]
      %v165 = vld [vmem:[%s153 + $0x58] sm:$0xff]
      %v166 = vld [vmem:[%s153 + $0x60] sm:$0xff]
      %v167 = vld [vmem:[%s153 + $0x68] sm:$0xff]
      %v168 = vld [vmem:[%s153 + $0x70] sm:$0xff]
      %v169 = vld [vmem:[%s153 + $0x78] sm:$0xff]
      %v171 = vlaneseq
      %v172 = vshrl.u32 %v171, 7
      %v173 = vsub.s32 0, %v172
      %v174 = vrot.slane %v150, %v173
      %v175 = vlaneseq
      %v176 = vshrl.u32 %v175, 7
      %v177 = vsub.s32 1, %v176
      %v178 = vrot.slane %v150, %v177
      %v179 = vlaneseq
      %v180 = vshrl.u32 %v179, 7
      %v181 = vsub.s32 2, %v180
      %v182 = vrot.slane %v150, %v181
      %v183 = vlaneseq
      %v184 = vshrl.u32 %v183, 7
      %v185 = vsub.s32 3, %v184
      %v186 = vrot.slane %v150, %v185
      %v187 = vlaneseq
      %v188 = vshrl.u32 %v187, 7
      %v189 = vsub.s32 4, %v188
      %v190 = vrot.slane %v150, %v189
      %v191 = vlaneseq
      %v192 = vshrl.u32 %v191, 7
      %v193 = vsub.s32 5, %v192
      %v194 = vrot.slane %v150, %v193
      %v195 = vlaneseq
      %v196 = vshrl.u32 %v195, 7
      %v197 = vsub.s32 6, %v196
      %v198 = vrot.slane %v150, %v197
      %v199 = vlaneseq
      %v200 = vshrl.u32 %v199, 7
      %v201 = vsub.s32 7, %v200
      %v202 = vrot.slane %v150, %v201
      %v211 = vmul.f32 %v154, %v174
      %v212 = vmul.f32 %v155, %v178
      %v213 = vmul.f32 %v156, %v182
      %v214 = vmul.f32 %v157, %v186
      %v215 = vmul.f32 %v158, %v190
      %v216 = vmul.f32 %v159, %v194
      %v217 = vmul.f32 %v160, %v198
      %v218 = vmul.f32 %v161, %v202
      %v219 = vmul.f32 %v162, %v174
      %v220 = vmul.f32 %v163, %v178
      %v221 = vmul.f32 %v164, %v182
      %v222 = vmul.f32 %v165, %v186
      %v223 = vmul.f32 %v166, %v190
      %v224 = vmul.f32 %v167, %v194
      %v225 = vmul.f32 %v168, %v198
      %v226 = vmul.f32 %v169, %v202
      %v227 = vadd.f32 %v211, %v212
      %v228 = vadd.f32 %v227, %v213
      %v229 = vadd.f32 %v228, %v214
      %v230 = vadd.f32 %v229, %v215
      %v231 = vadd.f32 %v230, %v216
      %v232 = vadd.f32 %v231, %v217
      %v233 = vadd.f32 %v232, %v218
      %234 = vadd.xlane.f32.xlu0 %v233
      %v235 = vpop.xlane.xlu0 %234
      %v236 = vadd.f32 %v219, %v220
      %v237 = vadd.f32 %v236, %v221
      %v238 = vadd.f32 %v237, %v222
      %v239 = vadd.f32 %v238, %v223
      %v240 = vadd.f32 %v239, %v224
      %v241 = vadd.f32 %v240, %v225
      %v242 = vadd.f32 %v241, %v226
      %243 = vadd.xlane.f32.xlu0 %v242
      %v244 = vpop.xlane.xlu0 %243
      %vm245 = vcmask 7168
      %246 = vst.msk [vmem:[%s148] sm:$0xff] %vm245, %v235
      %247 = vst.msk [vmem:[%s148 + $0x8] sm:$0xff] %vm245, %v244
      %s248 = smul.u32 2, %s13
      %p249 = scmp.lt.s32.totalorder %s248, 7
      %s250 = scalar_select %p249, %s248, 7
      %s251 = smul.addr %s250, 8
      %s252 = scalar_lea.vmem %s2, %s251
      // Predicated region
      $region29: #{_tensor_reduction_call.1} parent=27 // pred_check
        %p253 = pneg %p78
      $region30: #{_tensor_reduction_call.1} parent=27 // pred_check_branch
        %255 = sbr.rel (%p253) target = $region32
      $region31: #{_tensor_reduction_call.1} parent=27 // pred_region
        %s256 = smul.u32 2, %s13
      $region32: #{_tensor_reduction_call.1} parent=27 // pred_fallthru
        _
    $region28: #{_tensor_reduction_call.1} parent=5 // pred_fallthru
      _
    %p257 = scmp.le.s32.totalorder 2, %s8
    // Predicated region
    $region33: #{_tensor_reduction_call.1} parent=5 // pred_check
      %p258 = pneg %p257
    $region34: #{_tensor_reduction_call.1} parent=5 // pred_check_branch
      %260 = sbr.rel (%p258) target = $region36
    $region35: #{_tensor_reduction_call.1} parent=5 // pred_region
      %s261 = ssub.s32 %s8, 2
      // Predicated region
      $region37: #{_tensor_reduction_call.1} parent=35 // pred_check
        %p262 = pneg %p84
      $region38: #{_tensor_reduction_call.1} parent=35 // pred_check_branch
        %264 = sbr.rel (%p262) target = $region40
      $region39: #{_tensor_reduction_call.1} parent=35 // pred_region
        %s265 = smul.u32 2, %s14
        %p266 = scmp.lt.s32.totalorder %s265, 7
        %s267 = scalar_select %p266, %s265, 7
        %s268 = smul.addr %s267, 8
        %s269 = scalar_lea.vmem %s2, %s268
      $region40: #{_tensor_reduction_call.1} parent=35 // pred_fallthru
        _
    $region36: #{_tensor_reduction_call.1} parent=5 // pred_fallthru
      _
  $region6: #{_tensor_reduction_call.1} parent=0 // loop_footer
    %s12 = sadd.s32 1, %s8
  $region7: #{_tensor_reduction_call.1} parent=0 // loop_footer_branch
    %7 = sbr.rel target = $region3
  $region8: #{_tensor_reduction_call.1} parent=0 // loop_exit
    _

</llo_original>
